<compile_context>
chip_gen: v7x
topology: tpu7x:2x2x1
jax: 0.10.0
libtpu: 0.0.40
codegen_flags: <defaults>
</compile_context>

<pallas_src>
import functools

import jax
import jax.numpy as jnp
from jax.experimental import pallas as pl
from jax.experimental.pallas import tpu as pltpu

_MiB = 1 << 20


# ---------------------------------------------------------------------------
# Kernel
# ---------------------------------------------------------------------------
def channel_att_kernel(x_ref, w1_ref, b1_ref, w2_ref, b2_ref, out_ref, acc_ref,
                       *, hw_total, hw_chunk):
    # x_ref:  (BB, C, hw_chunk) VMEM, native dtype (f32 or bf16)
    # w1_ref: (C, C4)   conv1 weight with BN folded, transposed
    # b1_ref: (1, C4)   conv1 bias with BN folded
    # w2_ref: (C4, C)   conv2 weight, transposed
    # b2_ref: (1, C)
    # out_ref:(BB, 1, C)
    # acc_ref:(BB, C)   f32 pooled-sum accumulator (scratch)
    hw_idx = pl.program_id(1)

    @pl.when(hw_idx == 0)
    def _():
        acc_ref[...] = jnp.zeros_like(acc_ref)

    x = x_ref[...]                                           # (BB, C, hw_chunk)
    if hw_total % hw_chunk != 0:
        # Mask padded lanes of the last partial HW chunk.
        lane = jax.lax.broadcasted_iota(jnp.int32, x.shape, dimension=2)
        valid = (hw_idx * hw_chunk + lane) < hw_total
        x = jnp.where(valid, x, jnp.zeros_like(x))
    # Per-vreg f32 accumulation; no full-tile f32 temporary materialized.
    acc_ref[...] += jnp.sum(x, axis=-1, dtype=jnp.float32)

    @pl.when(hw_idx == pl.num_programs(1) - 1)
    def _():
        pooled = acc_ref[...] * (1.0 / hw_total)             # AdaptiveAvgPool2d(1)
        h = jnp.dot(pooled, w1_ref[...],
                    preferred_element_type=jnp.float32) + b1_ref[...]   # conv1 + BN
        h = jnp.maximum(h, 0.0)                                          # ReLU
        o = jnp.dot(h, w2_ref[...],
                    preferred_element_type=jnp.float32) + b2_ref[...]    # conv2
        o = 1.0 / (1.0 + jnp.exp(-o))                                    # Sigmoid
        out_ref[...] = o.reshape(out_ref.shape).astype(out_ref.dtype)


# ---------------------------------------------------------------------------
# Tiling / VMEM planning
# ---------------------------------------------------------------------------
def _round_up(x, m):
    return ((x + m - 1) // m) * m


def _sublane_pack(itemsize):
    # f32 -> 8 sublanes per vreg, bf16 -> 16, int8/fp8 -> 32
    return 8 * max(1, 4 // itemsize)


def _padded_tile_bytes(bb, c, hw, dtype):
    itemsize = jnp.dtype(dtype).itemsize
    return bb * _round_up(c, _sublane_pack(itemsize)) * _round_up(hw, 128) * itemsize


def _vmem_capacity_bytes():
    try:
        info = pltpu.get_tpu_info()
        for attr in ("vmem_capacity_bytes", "vmem_bytes", "vmem_capacity"):
            v = getattr(info, attr, None)
            if isinstance(v, int) and v > 0:
                return v
    except Exception:
        pass
    return 64 * _MiB   # conservative (v7x-sized) fallback


def _tpu_plan(B, C, HW, dtype):
    """Return (BB, hw_chunk, n_hw_chunks, vmem_limit_bytes)."""
    vmem_cap = _vmem_capacity_bytes()
    multi_core = vmem_cap <= 64 * _MiB   # v7x: 64 MiB/TC, 2 TCs; v5e/v6e: 128 MiB, 1 TC
    if multi_core:
        vmem_limit = max(32 * _MiB, min(56 * _MiB, vmem_cap - 8 * _MiB))
        x_budget = 20 * _MiB             # per input buffer (double-buffered)
    else:
        vmem_limit = 104 * _MiB
        x_budget = 44 * _MiB
    # Never let the double-buffered x tile alone exceed the requested limit.
    x_budget = min(x_budget, max(1 * _MiB, (vmem_limit - 2 * _MiB) // 2))

    max_bb = B
    if multi_core and B >= 2:
        max_bb = max(1, B // 2)          # keep >=2 batch steps so both TCs get work

    # Prefer full-HW tiles (single reduction chunk) with the largest fitting BB.
    bb = 0
    for d in range(1, max_bb + 1):
        if B % d == 0 and _padded_tile_bytes(d, C, HW, dtype) <= x_budget:
            bb = d
    if bb >= 1:
        return bb, HW, 1, vmem_limit

    # A single sample doesn't fit: chunk HW in 128-lane multiples (BB = 1).
    itemsize = jnp.dtype(dtype).itemsize
    row_bytes = _round_up(C, _sublane_pack(itemsize)) * itemsize
    max_lanes = max(128, x_budget // row_bytes)
    hw_chunk = max(128, (max_lanes // 128) * 128)
    hw_chunk = min(hw_chunk, _round_up(HW, 128))
    n_hw = -(-HW // hw_chunk)
    return 1, hw_chunk, n_hw, vmem_limit


def _make_x_spec(block_shape, index_map, small_tile):
    # Deeper buffering only helps when the per-step DMA is tiny; guard the
    # construction so older jax versions without pipeline_mode still work.
    if small_tile and hasattr(pl, "Buffered"):
        try:
            return pl.BlockSpec(block_shape, index_map,
                                pipeline_mode=pl.Buffered(3))
        except Exception:
            pass
    return pl.BlockSpec(block_shape, index_map)


# ---------------------------------------------------------------------------
# Wrapper
# ---------------------------------------------------------------------------
def channel_att(x, w1, b1, gamma, beta, run_mean, run_var, w2, b2, eps=1e-5):
    """x: (B, C, H, W); w1: (C//4, C, 1, 1); b1,gamma,beta,run_mean,run_var: (C//4,);
    w2: (C, C//4, 1, 1); b2: (C,).  Returns (B, C, 1, 1) f32 (eval-mode BatchNorm)."""
    B, C, H, W = x.shape
    C4 = w1.shape[0]
    HW = H * W

    # Fold eval-mode BatchNorm into conv1 (tiny parameter preprocessing).
    g = gamma.astype(jnp.float32) / jnp.sqrt(run_var.astype(jnp.float32) + eps)
    w1t = (w1[:, :, 0, 0].astype(jnp.float32) * g[:, None]).T              # (C, C4)
    b1f = (b1.astype(jnp.float32) * g + beta.astype(jnp.float32)
           - run_mean.astype(jnp.float32) * g).reshape(1, C4)              # (1, C4)
    w2t = w2[:, :, 0, 0].astype(jnp.float32).T                             # (C4, C)
    b2f = b2.astype(jnp.float32).reshape(1, C)                             # (1, C)

    # Free view of contiguous NCHW -> lane-dense last dim.
    x3 = x.reshape(B, C, HW)

    BB, hw_chunk, n_hw, vmem_limit = _tpu_plan(B, C, HW, x.dtype)
    grid = (B // BB, n_hw)

    x_tile_bytes = _padded_tile_bytes(BB, C, hw_chunk, x.dtype)
    x_spec = _make_x_spec((BB, C, hw_chunk), lambda b, hw: (b, 0, hw),
                          small_tile=(x_tile_bytes < 1 * _MiB and n_hw >= 4))

    kernel = functools.partial(channel_att_kernel, hw_total=HW, hw_chunk=hw_chunk)

    cost = pl.CostEstimate(
        flops=int(B * C * HW + 4 * B * C * C4),
        transcendentals=int(B * C),
        bytes_accessed=int(x3.nbytes + w1t.nbytes + w2t.nbytes
                           + b1f.nbytes + b2f.nbytes + B * C * 4),
    )

    out = pl.pallas_call(
        kernel,
        out_shape=jax.ShapeDtypeStruct((B, 1, C), jnp.float32),
        grid=grid,
        in_specs=[
            x_spec,
            pl.BlockSpec(w1t.shape, lambda b, hw: (0, 0)),
            pl.BlockSpec(b1f.shape, lambda b, hw: (0, 0)),
            pl.BlockSpec(w2t.shape, lambda b, hw: (0, 0)),
            pl.BlockSpec(b2f.shape, lambda b, hw: (0, 0)),
        ],
        out_specs=pl.BlockSpec((BB, 1, C), lambda b, hw: (b, 0, 0)),
        scratch_shapes=[pltpu.VMEM((BB, C), jnp.float32)],
        compiler_params=pltpu.CompilerParams(
            dimension_semantics=("parallel", "arbitrary"),
            vmem_limit_bytes=int(vmem_limit),
        ),
        cost_estimate=cost,
    )(x3, w1t, b1f, w2t, b2f)
    return out.reshape(B, C, 1, 1)


# ---------------------------------------------------------------------------
# Pure-JAX reference (matches PyTorch forward with eval-mode BatchNorm)
# ---------------------------------------------------------------------------
def channel_att_ref(x, w1, b1, gamma, beta, run_mean, run_var, w2, b2, eps=1e-5):
    B, C, H, W = x.shape
    pooled = jnp.mean(x.astype(jnp.float32), axis=(2, 3))                  # (B, C)
    h = pooled @ w1[:, :, 0, 0].astype(jnp.float32).T + b1                 # (B, C4)
    h = gamma * (h - run_mean) / jnp.sqrt(run_var + eps) + beta
    h = jnp.maximum(h, 0.0)
    o = h @ w2[:, :, 0, 0].astype(jnp.float32).T + b2                      # (B, C)
    o = 1.0 / (1.0 + jnp.exp(-o))
    return o.reshape(B, C, 1, 1)


if __name__ == "__main__":
    key = jax.random.PRNGKey(0)
    k = jax.random.split(key, 9)

    B, C, H, W = 2, 16, 16, 16
    C4 = C // 4

    x = jax.random.normal(k[0], (B, C, H, W), dtype=jnp.float32)
    w1 = jax.random.normal(k[1], (C4, C, 1, 1), dtype=jnp.float32) * 0.1
    b1 = jax.random.normal(k[2], (C4,), dtype=jnp.float32) * 0.1
    gamma = jax.random.normal(k[3], (C4,), dtype=jnp.float32) * 0.1 + 1.0
    beta = jax.random.normal(k[4], (C4,), dtype=jnp.float32) * 0.1
    run_mean = jax.random.normal(k[5], (C4,), dtype=jnp.float32) * 0.1
    run_var = jax.random.uniform(k[6], (C4,), dtype=jnp.float32,
                                 minval=0.5, maxval=1.5)
    w2 = jax.random.normal(k[7], (C, C4, 1, 1), dtype=jnp.float32) * 0.1
    b2 = jax.random.normal(k[8], (C,), dtype=jnp.float32) * 0.1

    out = channel_att(x, w1, b1, gamma, beta, run_mean, run_var, w2, b2)
    out = jax.block_until_ready(out)

    ref = channel_att_ref(x, w1, b1, gamma, beta, run_mean, run_var, w2, b2)
    assert out.shape == (B, C, 1, 1), out.shape
    assert jnp.allclose(out, ref, atol=2e-5, rtol=1e-4), (
        f"max abs diff {jnp.max(jnp.abs(out - ref))}")
    print("KERNEL_OK")
</pallas_src>

<mosaic_0001>
module attributes {stable_mosaic.version = 11 : i64} {
  func.func @channel_att_kernel(%arg0: i32, %arg1: i32, %arg2: memref<1x16x256xf32, #tpu.memory_space<vmem>>, %arg3: memref<16x4xf32, #tpu.memory_space<vmem>>, %arg4: memref<1x4xf32, #tpu.memory_space<vmem>>, %arg5: memref<4x16xf32, #tpu.memory_space<vmem>>, %arg6: memref<1x16xf32, #tpu.memory_space<vmem>>, %arg7: memref<1x1x16xf32, #tpu.memory_space<vmem>>, %arg8: memref<1x16xf32, #tpu.memory_space<vmem>>) attributes {dimension_semantics = [#tpu.dimension_semantics<parallel>, #tpu.dimension_semantics<arbitrary>], iteration_bounds = array<i64: 2, 1>, scalar_prefetch = 0 : i64, scratch_operands = 1 : i64, tpu.core_type = #tpu.core_type<tc>, window_params = [{transform_indices = @transform_0, window_bounds = array<i64: 1, 16, 256>}, {pipeline_mode = #tpu.pipeline_mode<synchronous>, transform_indices = @transform_1, window_bounds = array<i64: 16, 4>}, {pipeline_mode = #tpu.pipeline_mode<synchronous>, transform_indices = @transform_2, window_bounds = array<i64: 1, 4>}, {pipeline_mode = #tpu.pipeline_mode<synchronous>, transform_indices = @transform_3, window_bounds = array<i64: 4, 16>}, {pipeline_mode = #tpu.pipeline_mode<synchronous>, transform_indices = @transform_4, window_bounds = array<i64: 1, 16>}, {transform_indices = @transform_5, window_bounds = array<i64: 1, 1, 16>}]} {
    %c0_i32 = arith.constant 0 : i32
    %0 = arith.cmpi eq, %arg1, %c0_i32 : i32
    %1 = arith.extui %0 : i1 to i32
    %c0_i32_0 = arith.constant 0 : i32
    %2 = arith.cmpi ne, %1, %c0_i32_0 : i32
    scf.if %2 {
      %cst_9 = arith.constant 0.000000e+00 : f32
      %11 = vector.broadcast %cst_9 : f32 to vector<1x16xf32>
      %c0_10 = arith.constant 0 : index
      %c0_11 = arith.constant 0 : index
      %12 = vector.load %arg8[%c0_10, %c0_11] : memref<1x16xf32, #tpu.memory_space<vmem>>, vector<1x16xf32>
      tpu.vector_store %arg8[%c0_10, %c0_11], %11 {strides = array<i32>} : memref<1x16xf32, #tpu.memory_space<vmem>>, vector<1x16xf32>,
    } else {
    }
    %c0 = arith.constant 0 : index
    %c0_1 = arith.constant 0 : index
    %c0_2 = arith.constant 0 : index
    %3 = vector.load %arg2[%c0, %c0_1, %c0_2] : memref<1x16x256xf32, #tpu.memory_space<vmem>>, vector<1x16x256xf32>
    %c0_3 = arith.constant 0 : index
    %c0_4 = arith.constant 0 : index
    %4 = vector.load %arg8[%c0_3, %c0_4] : memref<1x16xf32, #tpu.memory_space<vmem>>, vector<1x16xf32>
    %cst = arith.constant dense<0.000000e+00> : vector<1x16xf32>
    %5 = vector.multi_reduction <add>, %3, %cst [2] : vector<1x16x256xf32> to vector<1x16xf32>
    %6 = arith.addf %4, %5 : vector<1x16xf32>
    %c0_5 = arith.constant 0 : index
    %c0_6 = arith.constant 0 : index
    %7 = vector.load %arg8[%c0_5, %c0_6] : memref<1x16xf32, #tpu.memory_space<vmem>>, vector<1x16xf32>
    tpu.vector_store %arg8[%c0_5, %c0_6], %6 {strides = array<i32>} : memref<1x16xf32, #tpu.memory_space<vmem>>, vector<1x16xf32>,
    %c0_i32_7 = arith.constant 0 : i32
    %8 = arith.cmpi eq, %arg1, %c0_i32_7 : i32
    %9 = arith.extui %8 : i1 to i32
    %c0_i32_8 = arith.constant 0 : i32
    %10 = arith.cmpi ne, %9, %c0_i32_8 : i32
    scf.if %10 {
      %c0_9 = arith.constant 0 : index
      %c0_10 = arith.constant 0 : index
      %11 = vector.load %arg8[%c0_9, %c0_10] : memref<1x16xf32, #tpu.memory_space<vmem>>, vector<1x16xf32>
      %cst_11 = arith.constant 3.906250e-03 : f32
      %12 = vector.broadcast %cst_11 : f32 to vector<1x16xf32>
      %13 = arith.mulf %11, %12 : vector<1x16xf32>
      %c0_12 = arith.constant 0 : index
      %c0_13 = arith.constant 0 : index
      %14 = vector.load %arg3[%c0_12, %c0_13] : memref<16x4xf32, #tpu.memory_space<vmem>>, vector<16x4xf32>
      %cst_14 = arith.constant dense<0.000000e+00> : vector<1x4xf32>
      %15 = tpu.matmul %13, %14, %cst_14 {dimension_numbers = #tpu.dot_dimension_numbers<[1], [0], [0], [1], [0, 0, 1, 1], [], []>} : vector<1x16xf32>, vector<16x4xf32>, vector<1x4xf32> -> vector<1x4xf32>
      %c0_15 = arith.constant 0 : index
      %c0_16 = arith.constant 0 : index
      %16 = vector.load %arg4[%c0_15, %c0_16] : memref<1x4xf32, #tpu.memory_space<vmem>>, vector<1x4xf32>
      %17 = arith.addf %15, %16 : vector<1x4xf32>
      %cst_17 = arith.constant 0.000000e+00 : f32
      %18 = vector.broadcast %cst_17 : f32 to vector<1x4xf32>
      %19 = arith.maximumf %17, %18 : vector<1x4xf32>
      %c0_18 = arith.constant 0 : index
      %c0_19 = arith.constant 0 : index
      %20 = vector.load %arg5[%c0_18, %c0_19] : memref<4x16xf32, #tpu.memory_space<vmem>>, vector<4x16xf32>
      %cst_20 = arith.constant dense<0.000000e+00> : vector<1x16xf32>
      %21 = tpu.matmul %19, %20, %cst_20 {dimension_numbers = #tpu.dot_dimension_numbers<[1], [0], [0], [1], [0, 0, 1, 1], [], []>} : vector<1x4xf32>, vector<4x16xf32>, vector<1x16xf32> -> vector<1x16xf32>
      %c0_21 = arith.constant 0 : index
      %c0_22 = arith.constant 0 : index
      %22 = vector.load %arg6[%c0_21, %c0_22] : memref<1x16xf32, #tpu.memory_space<vmem>>, vector<1x16xf32>
      %23 = arith.addf %21, %22 : vector<1x16xf32>
      %cst_23 = arith.constant 0.000000e+00 : f32
      %24 = vector.broadcast %cst_23 : f32 to vector<1x16xf32>
      %25 = arith.subf %24, %23 : vector<1x16xf32>
      %26 = math.exp %25 : vector<1x16xf32>
      %cst_24 = arith.constant 1.000000e+00 : f32
      %27 = vector.broadcast %cst_24 : f32 to vector<1x16xf32>
      %28 = arith.addf %27, %26 : vector<1x16xf32>
      %cst_25 = arith.constant 1.000000e+00 : f32
      %29 = vector.broadcast %cst_25 : f32 to vector<1x16xf32>
      %30 = arith.divf %29, %28 : vector<1x16xf32>
      %31 = vector.shape_cast %30 : vector<1x16xf32> to vector<1x1x16xf32>
      %c0_26 = arith.constant 0 : index
      %c0_27 = arith.constant 0 : index
      %c0_28 = arith.constant 0 : index
      %32 = vector.load %arg7[%c0_26, %c0_27, %c0_28] : memref<1x1x16xf32, #tpu.memory_space<vmem>>, vector<1x1x16xf32>
      tpu.vector_store %arg7[%c0_26, %c0_27, %c0_28], %31 {strides = array<i32>} : memref<1x1x16xf32, #tpu.memory_space<vmem>>, vector<1x1x16xf32>,
    } else {
    }
    return
  }
  func.func @transform_0(%arg0: i32, %arg1: i32) -> (i32, i32, i32) {
    %c0_i32 = arith.constant 0 : i32
    %c0_i32_0 = arith.constant 0 : i32
    return %arg0, %c0_i32, %arg1 : i32, i32, i32
  }
  func.func @transform_1(%arg0: i32, %arg1: i32) -> (i32, i32) {
    %c0_i32 = arith.constant 0 : i32
    %c0_i32_0 = arith.constant 0 : i32
    %c0_i32_1 = arith.constant 0 : i32
    return %c0_i32, %c0_i32_0 : i32, i32
  }
  func.func @transform_2(%arg0: i32, %arg1: i32) -> (i32, i32) {
    %c0_i32 = arith.constant 0 : i32
    %c0_i32_0 = arith.constant 0 : i32
    %c0_i32_1 = arith.constant 0 : i32
    return %c0_i32, %c0_i32_0 : i32, i32
  }
  func.func @transform_3(%arg0: i32, %arg1: i32) -> (i32, i32) {
    %c0_i32 = arith.constant 0 : i32
    %c0_i32_0 = arith.constant 0 : i32
    %c0_i32_1 = arith.constant 0 : i32
    return %c0_i32, %c0_i32_0 : i32, i32
  }
  func.func @transform_4(%arg0: i32, %arg1: i32) -> (i32, i32) {
    %c0_i32 = arith.constant 0 : i32
    %c0_i32_0 = arith.constant 0 : i32
    %c0_i32_1 = arith.constant 0 : i32
    return %c0_i32, %c0_i32_0 : i32, i32
  }
  func.func @transform_5(%arg0: i32, %arg1: i32) -> (i32, i32, i32) {
    %c0_i32 = arith.constant 0 : i32
    %c0_i32_0 = arith.constant 0 : i32
    %c0_i32_1 = arith.constant 0 : i32
    return %arg0, %c0_i32, %c0_i32_0 : i32, i32, i32
  }
}

</mosaic_0001>

<llo_original>
// kernel: tpu_custom_call.1
$region0: #{tpu_custom_call.1}
  #allocation0 [shape = 'u32[]', space=smem, size = 0x4, offset = 0x4, fixed_abs, tag = 'smem constant byte address 0x4 - core index']
  #allocation1 [shape = 'u32[144,128]{1,0:T(1,128)}', space=vmem, size = 0x12000, scoped, tag = 'internal scratch']
  #allocation2 [shape = 'f32[1,16]{1,0:T(1,128)}', space=vmem, size = 0x200, scoped, tag = 'scratch operand']
  %s0 = inlined_call_operand.hbm [shape: f32[2,16,256], index: 0, kind: input, shape index: {}]
  %s1 = inlined_call_operand.vmem [shape: f32[16,4], index: 1, kind: input, shape index: {}]
  %s2 = inlined_call_operand.vmem [shape: f32[1,4], index: 2, kind: input, shape index: {}]
  %s3 = inlined_call_operand.vmem [shape: f32[4,16], index: 3, kind: input, shape index: {}]
  %s4 = inlined_call_operand.vmem [shape: f32[1,16], index: 4, kind: input, shape index: {}]
  %s5 = inlined_call_operand.hbm [shape: f32[2,1,16], index: 5, kind: output, shape index: {}]
  %s6 = sld [smem:[#allocation0]]
  $region65: #{tpu_custom_call.1} parent=0
    _
  %s8 = ssub.s32 1, %s6
  %s9 = scalar_select 0, %s8, %s6
  $region1: #{tpu_custom_call.1} parent=0
    #allocation3 [shape = 'u8[32768]{0}', space=vmem, size = 0x8000, scoped, tag = 'input window, operand 0']
    #allocation4 [shape = 's32[2]{0}', space=sflag, size = 0x8, scoped, tag = 'scoped memory for tpu_custom_call.1']
    #allocation5 [shape = 's32[2]{0}', space=sflag, size = 0x8, scoped, tag = 'scoped memory for tpu_custom_call.1']
    #allocation6 [shape = 'u8[1024]{0}', space=vmem, size = 0x400, scoped, tag = 'output window, operand 0']
    %10 = vsyncpa [#allocation4], 0
    %s11 = scalar_lea.sflag [#allocation4], 1
    %12 = vsyncpa %s11, 0
    %13 = vsyncpa [#allocation5], 0
    %s14 = scalar_lea.sflag [#allocation5], 1
    %15 = vsyncpa %s14, 0
    loop: start=0, step=1, limit=4
    $region2: #{tpu_custom_call.1} parent=1 // loop_pre_header
      _
    $region3: #{tpu_custom_call.1} parent=1 // loop_header
      %s17 = sphi 0, %s21
      %p18 = scmp.ge.s32.totalorder %s17, 4
      %s24 = sphi 0, %s36
      %s25 = sphi 0, %s32
      %s26 = sphi 0, %s24
      %s27 = sphi 0, %s25
      %s28 = sphi 0, %s26
      %s29 = sphi 0, %s27
      %s41 = sphi 0, %s43
      %s44 = sphi 0, %s41
      %s45 = sphi 0, %s44
      %s61 = sphi 0, %s45
      %s65 = sphi 0, %s65
      %s67 = sphi 0, %s65
      %s68 = sphi 0, %s67
      %s82 = sphi 0, %s68
      %s86 = sphi 0, %s86
      %s88 = sphi 0, %s86
      %s89 = sphi 0, %s88
      %s103 = sphi 0, %s89
      %s107 = sphi 0, %s107
      %s109 = sphi 0, %s107
      %s110 = sphi 0, %s109
      %s124 = sphi 0, %s110
      %s128 = sphi 0, %s128
      %s130 = sphi 0, %s128
      %s131 = sphi 0, %s130
      %s145 = sphi 0, %s131
      %s151 = sphi 0, %s153
      %s154 = sphi 0, %s151
      %s155 = sphi 0, %s154
      %s171 = sphi 0, %s155
    $region4: #{tpu_custom_call.1} parent=1 // loop_header_branch
      %20 = sbr.rel (%p18) target = $region8
    $region5: #{tpu_custom_call.1} parent=1 // loop_body
      %s22 = ssub.s32 %s17, 1
      %s23 = ssub.s32 %s17, 2
      %s30 = sadd.s32 1, %s25
      %p31 = scmp.ge.s32.totalorder %s30, 1
      %s32 = scalar_select %p31, 0, %s30
      %s33 = sadd.s32 1, %s24
      %s34 = scalar_select %p31, %s33, %s24
      %p35 = scmp.ge.s32.totalorder %s34, 2
      %s36 = scalar_select %p35, 0, %s34
      %s37 = ssub.s32 %s24, %s36
      %s38 = ssub.s32 %s25, %s32
      %s39 = sor.u32 %s37, %s38
      %p40 = scmp.eq.s32.totalorder %s39, 0
      %s42 = sadd.s32 %s41, 1
      %s43 = scalar_select %p40, %s41, %s42
      %p46 = pneg %p40
      %p47 = scmp.eq.s32.totalorder %s17, 1
      %p48 = por %p46, %p47
      %p49 = scmp.ne.s32.totalorder %s41, %s44
      %p50 = scmp.eq.s32.totalorder %s17, 0
      %p51 = por %p49, %p50
      %p52 = scmp.ne.s32.totalorder %s41, %s44
      %p53 = scmp.eq.s32.totalorder %s22, 1
      %p54 = por %p52, %p53
      %p55 = scmp.ne.s32.totalorder %s44, %s45
      %p56 = scmp.eq.s32.totalorder %s22, 0
      %p57 = por %p55, %p56
      %p58 = scmp.ne.s32.totalorder %s44, %s45
      %p59 = scmp.eq.s32.totalorder %s23, 1
      %p60 = por %p58, %p59
      %p62 = scmp.ne.s32.totalorder %s45, %s61
      %p63 = scmp.eq.s32.totalorder %s23, 0
      %p64 = por %p62, %p63
      %s66 = sadd.s32 %s65, 1
      %p69 = scmp.eq.s32.totalorder %s17, 1
      %p70 = scmp.ne.s32.totalorder %s65, %s67
      %p71 = scmp.eq.s32.totalorder %s17, 0
      %p72 = por %p70, %p71
      %p73 = scmp.ne.s32.totalorder %s65, %s67
      %p74 = scmp.eq.s32.totalorder %s22, 1
      %p75 = por %p73, %p74
      %p76 = scmp.ne.s32.totalorder %s67, %s68
      %p77 = scmp.eq.s32.totalorder %s22, 0
      %p78 = por %p76, %p77
      %p79 = scmp.ne.s32.totalorder %s67, %s68
      %p80 = scmp.eq.s32.totalorder %s23, 1
      %p81 = por %p79, %p80
      %p83 = scmp.ne.s32.totalorder %s68, %s82
      %p84 = scmp.eq.s32.totalorder %s23, 0
      %p85 = por %p83, %p84
      %s87 = sadd.s32 %s86, 1
      %p90 = scmp.eq.s32.totalorder %s17, 1
      %p91 = scmp.ne.s32.totalorder %s86, %s88
      %p92 = scmp.eq.s32.totalorder %s17, 0
      %p93 = por %p91, %p92
      %p94 = scmp.ne.s32.totalorder %s86, %s88
      %p95 = scmp.eq.s32.totalorder %s22, 1
      %p96 = por %p94, %p95
      %p97 = scmp.ne.s32.totalorder %s88, %s89
      %p98 = scmp.eq.s32.totalorder %s22, 0
      %p99 = por %p97, %p98
      %p100 = scmp.ne.s32.totalorder %s88, %s89
      %p101 = scmp.eq.s32.totalorder %s23, 1
      %p102 = por %p100, %p101
      %p104 = scmp.ne.s32.totalorder %s89, %s103
      %p105 = scmp.eq.s32.totalorder %s23, 0
      %p106 = por %p104, %p105
      %s108 = sadd.s32 %s107, 1
      %p111 = scmp.eq.s32.totalorder %s17, 1
      %p112 = scmp.ne.s32.totalorder %s107, %s109
      %p113 = scmp.eq.s32.totalorder %s17, 0
      %p114 = por %p112, %p113
      %p115 = scmp.ne.s32.totalorder %s107, %s109
      %p116 = scmp.eq.s32.totalorder %s22, 1
      %p117 = por %p115, %p116
      %p118 = scmp.ne.s32.totalorder %s109, %s110
      %p119 = scmp.eq.s32.totalorder %s22, 0
      %p120 = por %p118, %p119
      %p121 = scmp.ne.s32.totalorder %s109, %s110
      %p122 = scmp.eq.s32.totalorder %s23, 1
      %p123 = por %p121, %p122
      %p125 = scmp.ne.s32.totalorder %s110, %s124
      %p126 = scmp.eq.s32.totalorder %s23, 0
      %p127 = por %p125, %p126
      %s129 = sadd.s32 %s128, 1
      %p132 = scmp.eq.s32.totalorder %s17, 1
      %p133 = scmp.ne.s32.totalorder %s128, %s130
      %p134 = scmp.eq.s32.totalorder %s17, 0
      %p135 = por %p133, %p134
      %p136 = scmp.ne.s32.totalorder %s128, %s130
      %p137 = scmp.eq.s32.totalorder %s22, 1
      %p138 = por %p136, %p137
      %p139 = scmp.ne.s32.totalorder %s130, %s131
      %p140 = scmp.eq.s32.totalorder %s22, 0
      %p141 = por %p139, %p140
      %p142 = scmp.ne.s32.totalorder %s130, %s131
      %p143 = scmp.eq.s32.totalorder %s23, 1
      %p144 = por %p142, %p143
      %p146 = scmp.ne.s32.totalorder %s131, %s145
      %p147 = scmp.eq.s32.totalorder %s23, 0
      %p148 = por %p146, %p147
      %s149 = ssub.s32 %s24, %s36
      %p150 = scmp.eq.s32.totalorder %s149, 0
      %s152 = sadd.s32 %s151, 1
      %s153 = scalar_select %p150, %s151, %s152
      %p156 = pneg %p150
      %p157 = scmp.eq.s32.totalorder %s17, 1
      %p158 = por %p156, %p157
      %p159 = scmp.ne.s32.totalorder %s151, %s154
      %p160 = scmp.eq.s32.totalorder %s17, 0
      %p161 = por %p159, %p160
      %p162 = scmp.ne.s32.totalorder %s151, %s154
      %p163 = scmp.eq.s32.totalorder %s22, 1
      %p164 = por %p162, %p163
      %p165 = scmp.ne.s32.totalorder %s154, %s155
      %p166 = scmp.eq.s32.totalorder %s22, 0
      %p167 = por %p165, %p166
      %p168 = scmp.ne.s32.totalorder %s154, %s155
      %p169 = scmp.eq.s32.totalorder %s23, 1
      %p170 = por %p168, %p169
      %p172 = scmp.ne.s32.totalorder %s155, %s171
      %p173 = scmp.eq.s32.totalorder %s23, 0
      %p174 = por %p172, %p173
      %p175 = scmp.le.s32.totalorder 1, %s17
      %p176 = scmp.lt.s32.totalorder %s17, 3
      %p177 = pnand %p175, %p176
      %p178 = pneg %p177
      // Predicated region
      $region9: #{tpu_custom_call.1} parent=5 // pred_check
        _
      $region10: #{tpu_custom_call.1} parent=5 // pred_check_branch
        %180 = sbr.rel (%p177) target = $region12
      $region11: #{tpu_custom_call.1} parent=5 // pred_region
        %s181 = ssub.s32 %s17, 1
        // Predicated region
        $region13: #{tpu_custom_call.1} parent=11 // pred_check
          %p182 = pneg %p78
        $region14: #{tpu_custom_call.1} parent=11 // pred_check_branch
          %184 = sbr.rel (%p182) target = $region16
        $region15: #{tpu_custom_call.1} parent=11 // pred_region
          _
        $region16: #{tpu_custom_call.1} parent=11 // pred_fallthru
          _
        // Predicated region
        $region17: #{tpu_custom_call.1} parent=11 // pred_check
          %p185 = pneg %p99
        $region18: #{tpu_custom_call.1} parent=11 // pred_check_branch
          %187 = sbr.rel (%p185) target = $region20
        $region19: #{tpu_custom_call.1} parent=11 // pred_region
          _
        $region20: #{tpu_custom_call.1} parent=11 // pred_fallthru
          _
        // Predicated region
        $region21: #{tpu_custom_call.1} parent=11 // pred_check
          %p188 = pneg %p120
        $region22: #{tpu_custom_call.1} parent=11 // pred_check_branch
          %190 = sbr.rel (%p188) target = $region24
        $region23: #{tpu_custom_call.1} parent=11 // pred_region
          _
        $region24: #{tpu_custom_call.1} parent=11 // pred_fallthru
          _
        // Predicated region
        $region25: #{tpu_custom_call.1} parent=11 // pred_check
          %p191 = pneg %p141
        $region26: #{tpu_custom_call.1} parent=11 // pred_check_branch
          %193 = sbr.rel (%p191) target = $region28
        $region27: #{tpu_custom_call.1} parent=11 // pred_region
          _
        $region28: #{tpu_custom_call.1} parent=11 // pred_fallthru
          _
      $region12: #{tpu_custom_call.1} parent=5 // pred_fallthru
        _
      %p194 = scmp.lt.s32.totalorder %s17, 2
      // Predicated region
      $region29: #{tpu_custom_call.1} parent=5 // pred_check
        %p195 = pneg %p194
      $region30: #{tpu_custom_call.1} parent=5 // pred_check_branch
        %197 = sbr.rel (%p195) target = $region32
      $region31: #{tpu_custom_call.1} parent=5 // pred_region
        // Predicated region
        $region33: #{tpu_custom_call.1} parent=31 // pred_check
          %p198 = pneg %p51
        $region34: #{tpu_custom_call.1} parent=31 // pred_check_branch
          %200 = sbr.rel (%p198) target = $region36
        $region35: #{tpu_custom_call.1} parent=31 // pred_region
          %s201 = sand.u32 %s41, 1
          %s202 = scalar_lea.sflag [#allocation4], %s201
          %s203 = sand.u32 %s41, 1
          %s204 = smul.addr %s203, 32
          %s205 = scalar_lea.vmem [#allocation3], %s204
          %s206 = smul.u32 2, %s25
          %s208 = ssub.s32 512, 512
          %209 = vsyncadd %s202, %s208
          %s210 = smul.addr %s24, 4
          %s211 = sadd.s32 %s206, %s210
          %s212 = smul.addr %s211, 128
          %s213 = scalar_lea.hbm %s0, %s212
          %s214 = sshll.u32 %s205, 4
          %s215 = int_to_ptr.vmem [resolvable:$true] %s214
          %220 = dma.hbm_to_vmem [thread:$0]  %s213, 512, %s215, %s202, 256, 256, 16
        $region36: #{tpu_custom_call.1} parent=31 // pred_fallthru
          _
      $region32: #{tpu_custom_call.1} parent=5 // pred_fallthru
        _
      %p221 = scmp.le.s32.totalorder 1, %s17
      %p222 = scmp.lt.s32.totalorder %s17, 3
      %p223 = pnand %p221, %p222
      %p224 = pneg %p223
      // Predicated region
      $region37: #{tpu_custom_call.1} parent=5 // pred_check
        _
      $region38: #{tpu_custom_call.1} parent=5 // pred_check_branch
        %226 = sbr.rel (%p223) target = $region40
      $region39: #{tpu_custom_call.1} parent=5 // pred_region
        %s227 = ssub.s32 %s17, 1
        %s228 = sand.u32 %s44, 1
        %s229 = scalar_lea.sflag [#allocation4], %s228
        %s230 = sand.u32 %s44, 1
        %s231 = smul.addr %s230, 32
        %s232 = scalar_lea.vmem [#allocation3], %s231
        // Predicated region
        $region41: #{tpu_custom_call.1} parent=39 // pred_check
          %p233 = pneg %p57
        $region42: #{tpu_custom_call.1} parent=39 // pred_check_branch
          %235 = sbr.rel (%p233) target = $region44
        $region43: #{tpu_custom_call.1} parent=39 // pred_region
          %236 = dma.done %s229, 512
        $region44: #{tpu_custom_call.1} parent=39 // pred_fallthru
          _
        %s237 = sand.u32 %s44, 1
        %s238 = scalar_lea.sflag [#allocation4], %s237
        %s239 = sand.u32 %s44, 1
        %s240 = smul.addr %s239, 32
        %s241 = scalar_lea.vmem [#allocation3], %s240
        %p242 = pneg %p57
        %p243 = pneg %p54
        %p244 = pneg %p78
        %p245 = pneg %p75
        %p246 = pneg %p99
        %p247 = pneg %p96
        %p248 = pneg %p120
        %p249 = pneg %p117
        %p250 = pneg %p141
        %p251 = pneg %p138
        %p252 = pneg %p167
        %p253 = pneg %p164
        %s254 = sand.u32 %s154, 1
        %s255 = scalar_lea.sflag [#allocation5], %s254
        %s256 = sand.u32 %s154, 1
        %s257 = scalar_lea.vmem [#allocation6], %s256
        %s258 = smul.u32 2, %s27
        %p259 = scmp.eq.s32.totalorder %s27, 0
        // Predicated region
        $region45: #{tpu_custom_call.1} parent=39 // pred_check
          %p260 = pneg %p259
        $region46: #{tpu_custom_call.1} parent=39 // pred_check_branch
          %262 = sbr.rel (%p260) target = $region48
        $region47: #{tpu_custom_call.1} parent=39 // pred_region
          %vm263 = vcmask 122880
          %264 = vst.msk [vmem:[#allocation2] sm:$0x1] %vm263, 0.0
        $region48: #{tpu_custom_call.1} parent=39 // pred_fallthru
          _
        %v265 = vld [vmem:[%s232] sm:$0xff]
        %v266 = vld [vmem:[%s232 + $0x8] sm:$0xff]
        %v267 = vld [vmem:[%s232 + $0x10] sm:$0xff]
        %v268 = vld [vmem:[%s232 + $0x18] sm:$0xff]
        %v269 = vld [vmem:[#allocation2] sm:$0x1]
        %v270 = vadd.f32 %v265, %v266
        %271 = vadd.xlane.f32.xlu0 %v270
        %v272 = vpop.xlane.xlu0 %271
        %v273 = vadd.f32 %v267, %v268
        %274 = vadd.xlane.f32.xlu0 %v273
        %v275 = vpop.xlane.xlu0 %274
        %v278 = vlaneseq
        %v279 = vshrl.u32 %v278, 7
        %v280 = vsub.s32 0, %v279
        %v281 = vrot.slane %v272, %v280
        %v282 = vlaneseq
        %v283 = vshrl.u32 %v282, 7
        %v284 = vsub.s32 1, %v283
        %v285 = vrot.slane %v272, %v284
        %v286 = vlaneseq
        %v287 = vshrl.u32 %v286, 7
        %v288 = vsub.s32 2, %v287
        %v289 = vrot.slane %v272, %v288
        %v290 = vlaneseq
        %v291 = vshrl.u32 %v290, 7
        %v292 = vsub.s32 3, %v291
        %v293 = vrot.slane %v272, %v292
        %v294 = vlaneseq
        %v295 = vshrl.u32 %v294, 7
        %v296 = vsub.s32 4, %v295
        %v297 = vrot.slane %v272, %v296
        %v298 = vlaneseq
        %v299 = vshrl.u32 %v298, 7
        %v300 = vsub.s32 5, %v299
        %v301 = vrot.slane %v272, %v300
        %v302 = vlaneseq
        %v303 = vshrl.u32 %v302, 7
        %v304 = vsub.s32 6, %v303
        %v305 = vrot.slane %v272, %v304
        %v306 = vlaneseq
        %v307 = vshrl.u32 %v306, 7
        %v308 = vsub.s32 7, %v307
        %v309 = vrot.slane %v272, %v308
        %v310 = vlaneseq
        %v311 = vshrl.u32 %v310, 7
        %v312 = vsub.s32 0, %v311
        %v313 = vrot.slane %v275, %v312
        %v314 = vlaneseq
        %v315 = vshrl.u32 %v314, 7
        %v316 = vsub.s32 1, %v315
        %v317 = vrot.slane %v275, %v316
        %v318 = vlaneseq
        %v319 = vshrl.u32 %v318, 7
        %v320 = vsub.s32 2, %v319
        %v321 = vrot.slane %v275, %v320
        %v322 = vlaneseq
        %v323 = vshrl.u32 %v322, 7
        %v324 = vsub.s32 3, %v323
        %v325 = vrot.slane %v275, %v324
        %v326 = vlaneseq
        %v327 = vshrl.u32 %v326, 7
        %v328 = vsub.s32 4, %v327
        %v329 = vrot.slane %v275, %v328
        %v330 = vlaneseq
        %v331 = vshrl.u32 %v330, 7
        %v332 = vsub.s32 5, %v331
        %v333 = vrot.slane %v275, %v332
        %v334 = vlaneseq
        %v335 = vshrl.u32 %v334, 7
        %v336 = vsub.s32 6, %v335
        %v337 = vrot.slane %v275, %v336
        %v338 = vlaneseq
        %v339 = vshrl.u32 %v338, 7
        %v340 = vsub.s32 7, %v339
        %v341 = vrot.slane %v275, %v340
        %v342 = vcombine.low %v281, %v285
        %v343 = vcombine.low %v289, %v293
        %v344 = vcombine.low %v297, %v301
        %v345 = vcombine.low %v305, %v309
        %v347 = vunpack.c.l.s4 1966171168
        %v348 = vunpack.c.0.s8 %v347
        %v349 = vlaneseq
        %v350 = vshrl.u32 %v349, 7
        %v351 = vsub.s32 %v348, %v350
        %v352 = vrot.slane %v342, %v351
        %v354 = vunpack.c.l.s4 1966171168
        %v355 = vunpack.c.0.s8 %v354
        %v356 = vlaneseq
        %v357 = vshrl.u32 %v356, 7
        %v358 = vsub.s32 %v355, %v357
        %v359 = vrot.slane %v343, %v358
        %v361 = vunpack.c.l.s4 1966171168
        %v362 = vunpack.c.0.s8 %v361
        %v363 = vlaneseq
        %v364 = vshrl.u32 %v363, 7
        %v365 = vsub.s32 %v362, %v364
        %v366 = vrot.slane %v344, %v365
        %v368 = vunpack.c.l.s4 1966171168
        %v369 = vunpack.c.0.s8 %v368
        %v370 = vlaneseq
        %v371 = vshrl.u32 %v370, 7
        %v372 = vsub.s32 %v369, %v371
        %v373 = vrot.slane %v345, %v372
        %v374 = vcombine.low %v352, %v359
        %v375 = vcombine.low %v366, %v373
        %v377 = vunpack.c.l.s4 1966171168
        %v378 = vunpack.c.0.s8 %v377
        %v379 = vlaneseq
        %v380 = vshrl.u32 %v379, 7
        %v381 = vsub.s32 %v378, %v380
        %v382 = vrot.slane %v374, %v381
        %v384 = vunpack.c.l.s4 1966171168
        %v385 = vunpack.c.0.s8 %v384
        %v386 = vlaneseq
        %v387 = vshrl.u32 %v386, 7
        %v388 = vsub.s32 %v385, %v387
        %v389 = vrot.slane %v375, %v388
        %v390 = vcombine.low %v382, %v389
        %v391 = vcombine.low %v313, %v317
        %v392 = vcombine.low %v321, %v325
        %v393 = vcombine.low %v329, %v333
        %v394 = vcombine.low %v337, %v341
        %v396 = vunpack.c.l.s4 1966171168
        %v397 = vunpack.c.0.s8 %v396
        %v398 = vlaneseq
        %v399 = vshrl.u32 %v398, 7
        %v400 = vsub.s32 %v397, %v399
        %v401 = vrot.slane %v391, %v400
        %v403 = vunpack.c.l.s4 1966171168
        %v404 = vunpack.c.0.s8 %v403
        %v405 = vlaneseq
        %v406 = vshrl.u32 %v405, 7
        %v407 = vsub.s32 %v404, %v406
        %v408 = vrot.slane %v392, %v407
        %v410 = vunpack.c.l.s4 1966171168
        %v411 = vunpack.c.0.s8 %v410
        %v412 = vlaneseq
        %v413 = vshrl.u32 %v412, 7
        %v414 = vsub.s32 %v411, %v413
        %v415 = vrot.slane %v393, %v414
        %v417 = vunpack.c.l.s4 1966171168
        %v418 = vunpack.c.0.s8 %v417
        %v419 = vlaneseq
        %v420 = vshrl.u32 %v419, 7
        %v421 = vsub.s32 %v418, %v420
        %v422 = vrot.slane %v394, %v421
        %v423 = vcombine.low %v401, %v408
        %v424 = vcombine.low %v415, %v422
        %v426 = vunpack.c.l.s4 1966171168
        %v427 = vunpack.c.0.s8 %v426
        %v428 = vlaneseq
        %v429 = vshrl.u32 %v428, 7
        %v430 = vsub.s32 %v427, %v429
        %v431 = vrot.slane %v423, %v430
        %v433 = vunpack.c.l.s4 1966171168
        %v434 = vunpack.c.0.s8 %v433
        %v435 = vlaneseq
        %v436 = vshrl.u32 %v435, 7
        %v437 = vsub.s32 %v434, %v436
        %v438 = vrot.slane %v424, %v437
        %v439 = vcombine.low %v431, %v438
        %440 = vset.pattern.permute.xlu0 0
        %441 = vperm.xlu0 %440, %v390
        %v442 = vpop.permute.xlu0 %441
        %443 = vset.pattern.permute.xlu0 0
        %444 = vperm.xlu0 %443, %v439
        %v445 = vpop.permute.xlu0 %444
        %v446 = vlaneseq
        %v447 = vand.u32 %v446, 127
        %v448 = vlaneseq
        %v449 = vshrl.u32 %v448, 7
        %v450 = vsub.s32 %v447, %v449
        %v451 = vrot.slane %v442, %v450
        %v452 = vadd.s32 %v447, 4294967288
        %v453 = vlaneseq
        %v454 = vshrl.u32 %v453, 7
        %v455 = vsub.s32 %v452, %v454
        %v456 = vrot.slane %v445, %v455
        %vm457 = vcmask 130112
        %v458 = vsel %vm457, %v456, %v451
        %v460 = vunpack.c.l.s4 1966171168
        %v461 = vunpack.c.0.s8 %v460
        %v462 = vlaneseq
        %v463 = vshrl.u32 %v462, 7
        %v464 = vsub.s32 %v461, %v463
        %v465 = vrot.slane %v458, %v464
        %v467 = vunpack.c.l.s4 1966171168
        %v468 = vunpack.c.0.s8 %v467
        %v469 = vlaneseq
        %v470 = vshrl.u32 %v469, 7
        %v471 = vsub.s32 %v468, %v470
        %v472 = vrot.slane %v465, %v471
        %v474 = vadd.f32 %v269, %v472
        %vm475 = vcmask 122880
        %476 = vst.msk [vmem:[#allocation2] sm:$0x1] %vm475, %v474
        // Predicated region
        $region49: #{tpu_custom_call.1} parent=39 // pred_check
          %p477 = pneg %p259
        $region50: #{tpu_custom_call.1} parent=39 // pred_check_branch
          %479 = sbr.rel (%p477) target = $region52
        $region51: #{tpu_custom_call.1} parent=39 // pred_region
          %v480 = vld [vmem:[#allocation2] sm:$0x1]
          %v481 = vmul.f32 %v480, 0.00390625
          %v482 = vld [vmem:[%s1] sm:$0xff]
          %v483 = vld [vmem:[%s1 + $0x8] sm:$0xff]
          %v484 = vld [vmem:[%s2] sm:$0x1]
          %vm485 = vcmask 130048
          %v487 = vsel %vm485, %v481, 0
          %489 = vmatprep.subr.mxu0 0.0
          %490 = vmatpush1.msra.mxu0 %v482
          %491 = vmatprep.subr.mxu0 0.0
          %492 = vmatpush1.msra.mxu0 %v483
          %493 = vmatprep.subr.mxu0 0.0
          %494 = vmatpush1.msra.mxu0 0.0
          %495 = vmatprep.subr.mxu0 0.0
          %496 = vmatpush1.msra.mxu0 0.0
          %497 = vmatprep.subr.mxu0 0.0
          %498 = vmatpush1.msra.mxu0 0.0
          %499 = vmatprep.subr.mxu0 0.0
          %500 = vmatpush1.msra.mxu0 0.0
          %501 = vmatprep.subr.mxu0 0.0
          %502 = vmatpush1.msra.mxu0 0.0
          %503 = vmatprep.subr.mxu0 0.0
          %504 = vmatpush1.msra.mxu0 0.0
          %505 = vmatprep.subr.mxu0 0.0
          %506 = vmatpush1.msra.mxu0 0.0
          %507 = vmatprep.subr.mxu0 0.0
          %508 = vmatpush1.msra.mxu0 0.0
          %509 = vmatprep.subr.mxu0 0.0
          %510 = vmatpush1.msra.mxu0 0.0
          %511 = vmatprep.subr.mxu0 0.0
          %512 = vmatpush1.msra.mxu0 0.0
          %513 = vmatprep.subr.mxu0 0.0
          %514 = vmatpush1.msra.mxu0 0.0
          %515 = vmatprep.subr.mxu0 0.0
          %516 = vmatpush1.msra.mxu0 0.0
          %517 = vmatprep.subr.mxu0 0.0
          %518 = vmatpush1.msra.mxu0 0.0
          %519 = vmatprep.subr.mxu0 0.0
          %520 = vmatpush1.msra.mxu0 0.0
          %521 = vmatprep.subr.mxu0 0.0
          %522 = vmatpush1.msra.mxu0 0.0
          %523 = vmatprep.subr.mxu0 0.0
          %524 = vmatpush1.msra.mxu0 0.0
          %525 = vmatprep.subr.mxu0 0.0
          %526 = vmatpush1.msra.mxu0 0.0
          %527 = vmatprep.subr.mxu0 0.0
          %528 = vmatpush1.msra.mxu0 0.0
          %529 = vmatprep.subr.mxu0 0.0
          %530 = vmatpush1.msra.mxu0 0.0
          %531 = vmatprep.subr.mxu0 0.0
          %532 = vmatpush1.msra.mxu0 0.0
          %533 = vmatprep.subr.mxu0 0.0
          %534 = vmatpush1.msra.mxu0 0.0
          %535 = vmatprep.subr.mxu0 0.0
          %536 = vmatpush1.msra.mxu0 0.0
          %537 = vmatprep.subr.mxu0 0.0
          %538 = vmatpush1.msra.mxu0 0.0
          %539 = vmatprep.subr.mxu0 0.0
          %540 = vmatpush1.msra.mxu0 0.0
          %541 = vmatprep.subr.mxu0 0.0
          %542 = vmatpush1.msra.mxu0 0.0
          %543 = vmatprep.subr.mxu0 0.0
          %544 = vmatpush1.msra.mxu0 0.0
          %545 = vmatprep.subr.mxu0 0.0
          %546 = vmatpush1.msra.mxu0 0.0
          %547 = vmatprep.subr.mxu0 0.0
          %548 = vmatpush1.msra.mxu0 0.0
          %549 = vmatprep.subr.mxu0 0.0
          %550 = vmatpush1.msra.mxu0 0.0
          %551 = vmatprep.subr.mxu0 0.0
          %552 = vmatpush1.msra.mxu0 0.0
          %553 = vmatprep.mubr.f32.mxu0 0.0
          %554 = vmatmul.mubr.f32.gmra.mrb[0].mxu0 %v487
          %v555 = vpop.f32.mrb[0].mxu0
          %v556 = vadd.f32 %v484, %v555
          %v557 = vpop.f32.mrb[0].mxu0
          %558 = vdwg.mxu0
          %v559 = vmax.f32 %v556, 0.0
          %v560 = vld [vmem:[%s3] sm:$0xf]
          %v561 = vld [vmem:[%s4] sm:$0x1]
          %vm562 = vcmask 31744
          %v564 = vsel %vm562, %v559, 0
          %vm566 = vcmask 1043456
          %v568 = vsel %vm566, %v560, 0
          %570 = vmatprep.subr.mxu0 0.0
          %571 = vmatpush1.msra.mxu0 %v568
          %572 = vmatprep.subr.mxu0 0.0
          %573 = vmatpush1.msra.mxu0 0.0
          %574 = vmatprep.subr.mxu0 0.0
          %575 = vmatpush1.msra.mxu0 0.0
          %576 = vmatprep.subr.mxu0 0.0
          %577 = vmatpush1.msra.mxu0 0.0
          %578 = vmatprep.subr.mxu0 0.0
          %579 = vmatpush1.msra.mxu0 0.0
          %580 = vmatprep.subr.mxu0 0.0
          %581 = vmatpush1.msra.mxu0 0.0
          %582 = vmatprep.subr.mxu0 0.0
          %583 = vmatpush1.msra.mxu0 0.0
          %584 = vmatprep.subr.mxu0 0.0
          %585 = vmatpush1.msra.mxu0 0.0
          %586 = vmatprep.subr.mxu0 0.0
          %587 = vmatpush1.msra.mxu0 0.0
          %588 = vmatprep.subr.mxu0 0.0
          %589 = vmatpush1.msra.mxu0 0.0
          %590 = vmatprep.subr.mxu0 0.0
          %591 = vmatpush1.msra.mxu0 0.0
          %592 = vmatprep.subr.mxu0 0.0
          %593 = vmatpush1.msra.mxu0 0.0
          %594 = vmatprep.subr.mxu0 0.0
          %595 = vmatpush1.msra.mxu0 0.0
          %596 = vmatprep.subr.mxu0 0.0
          %597 = vmatpush1.msra.mxu0 0.0
          %598 = vmatprep.subr.mxu0 0.0
          %599 = vmatpush1.msra.mxu0 0.0
          %600 = vmatprep.subr.mxu0 0.0
          %601 = vmatpush1.msra.mxu0 0.0
          %602 = vmatprep.subr.mxu0 0.0
          %603 = vmatpush1.msra.mxu0 0.0
          %604 = vmatprep.subr.mxu0 0.0
          %605 = vmatpush1.msra.mxu0 0.0
          %606 = vmatprep.subr.mxu0 0.0
          %607 = vmatpush1.msra.mxu0 0.0
          %608 = vmatprep.subr.mxu0 0.0
          %609 = vmatpush1.msra.mxu0 0.0
          %610 = vmatprep.subr.mxu0 0.0
          %611 = vmatpush1.msra.mxu0 0.0
          %612 = vmatprep.subr.mxu0 0.0
          %613 = vmatpush1.msra.mxu0 0.0
          %614 = vmatprep.subr.mxu0 0.0
          %615 = vmatpush1.msra.mxu0 0.0
          %616 = vmatprep.subr.mxu0 0.0
          %617 = vmatpush1.msra.mxu0 0.0
          %618 = vmatprep.subr.mxu0 0.0
          %619 = vmatpush1.msra.mxu0 0.0
          %620 = vmatprep.subr.mxu0 0.0
          %621 = vmatpush1.msra.mxu0 0.0
          %622 = vmatprep.subr.mxu0 0.0
          %623 = vmatpush1.msra.mxu0 0.0
          %624 = vmatprep.subr.mxu0 0.0
          %625 = vmatpush1.msra.mxu0 0.0
          %626 = vmatprep.subr.mxu0 0.0
          %627 = vmatpush1.msra.mxu0 0.0
          %628 = vmatprep.subr.mxu0 0.0
          %629 = vmatpush1.msra.mxu0 0.0
          %630 = vmatprep.subr.mxu0 0.0
          %631 = vmatpush1.msra.mxu0 0.0
          %632 = vmatprep.subr.mxu0 0.0
          %633 = vmatpush1.msra.mxu0 0.0
          %634 = vmatprep.mubr.f32.mxu0 0.0
          %635 = vmatmul.mubr.f32.gmra.mrb[0].mxu0 %v564
          %v636 = vpop.f32.mrb[0].mxu0
          %v637 = vadd.f32 %v561, %v636
          %v638 = vpop.f32.mrb[0].mxu0
          %639 = vdwg.mxu0
          %v640 = vsub.f32 0.0, %v637
          %v641 = vmul.f32 %v640, 1.442695
          %v642 = vpow.pop %v641
          %v643 = vadd.f32 %v642, 1.0
          %v644 = vrcp.pop %v643
          %v645 = vmul.f32 1.0, %v644
          %646 = vst.msk [vmem:[%s257] sm:$0x1] %vm475, %v645
        $region52: #{tpu_custom_call.1} parent=39 // pred_fallthru
          _
        %s647 = sand.u32 %s154, 1
        %s648 = scalar_lea.sflag [#allocation5], %s647
        %s649 = sand.u32 %s154, 1
        %s650 = scalar_lea.vmem [#allocation6], %s649
        // Predicated region
        $region53: #{tpu_custom_call.1} parent=39 // pred_check
          %p651 = pneg %p164
        $region54: #{tpu_custom_call.1} parent=39 // pred_check_branch
          %653 = sbr.rel (%p651) target = $region56
        $region55: #{tpu_custom_call.1} parent=39 // pred_region
          %s655 = ssub.s32 16, 16
          %656 = vsyncadd %s648, %s655
          %s657 = smul.addr %s26, 16
          %s658 = scalar_lea.hbm %s5, %s657
          %s660 = sshll.u32 %s650, 4
          %s661 = int_to_ptr.vmem [resolvable:$true] %s660
          %663 = dma.vmem_to_hbm [thread:$0]  %s661, 16, %s658, %s648
        $region56: #{tpu_custom_call.1} parent=39 // pred_fallthru
          _
      $region40: #{tpu_custom_call.1} parent=5 // pred_fallthru
        _
      %p664 = scmp.le.s32.totalorder 2, %s17
      // Predicated region
      $region57: #{tpu_custom_call.1} parent=5 // pred_check
        %p665 = pneg %p664
      $region58: #{tpu_custom_call.1} parent=5 // pred_check_branch
        %667 = sbr.rel (%p665) target = $region60
      $region59: #{tpu_custom_call.1} parent=5 // pred_region
        %s668 = ssub.s32 %s17, 2
        // Predicated region
        $region61: #{tpu_custom_call.1} parent=59 // pred_check
          %p669 = pneg %p170
        $region62: #{tpu_custom_call.1} parent=59 // pred_check_branch
          %671 = sbr.rel (%p669) target = $region64
        $region63: #{tpu_custom_call.1} parent=59 // pred_region
          %s672 = sand.u32 %s155, 1
          %s673 = scalar_lea.sflag [#allocation5], %s672
          %s674 = sand.u32 %s155, 1
          %s675 = scalar_lea.vmem [#allocation6], %s674
          %676 = dma.done %s673, 16
        $region64: #{tpu_custom_call.1} parent=59 // pred_fallthru
          _
      $region60: #{tpu_custom_call.1} parent=5 // pred_fallthru
        _
    $region6: #{tpu_custom_call.1} parent=1 // loop_footer
      %s21 = sadd.s32 1, %s17
    $region7: #{tpu_custom_call.1} parent=1 // loop_footer_branch
      %16 = sbr.rel target = $region3
    $region8: #{tpu_custom_call.1} parent=1 // loop_exit
      _
    %677 = vsyncpa [#allocation4], 1
    %s678 = scalar_lea.sflag [#allocation4], 1
    %679 = vsyncpa %s678, 1
    %680 = vsyncpa [#allocation5], 1
    %s681 = scalar_lea.sflag [#allocation5], 1
    %682 = vsyncpa %s681, 1

</llo_original>
